<compile_context>
chip_gen: v6e
topology: v6e:2x2x1
jax: 0.10.0
libtpu: 0.0.40
codegen_flags: <defaults>
</compile_context>

<pallas_src>
import functools

import jax
import jax.numpy as jnp
from jax.experimental import pallas as pl
from jax.experimental.pallas import tpu as pltpu

D_IMG = 28 * 28


def _round_up(x, m):
    return ((x + m - 1) // m) * m


# ----------------------------------------------------------------------------
# Pallas kernel: whole CVAE forward (encode -> reparameterize -> decode)
# ----------------------------------------------------------------------------
def cvae_kernel(x_ref, c_ref, eps_ref,
                w1x_ref, w1c_ref, b1_ref,
                wh_ref, bh_ref,
                w3z_ref, w3c_ref, b3_ref,
                w4_ref, b4_ref,
                recon_ref, heads_ref):
    x = x_ref[...]            # [TB, 784] f32
    c = c_ref[...]            # [TB, C]   f32
    eps = eps_ref[...]        # [TB, L]   f32
    L = eps.shape[-1]

    # encode: h1 = relu(fc1(cat([x, c], 1)))  (split-matmul form)
    h1 = jnp.dot(x, w1x_ref[...], preferred_element_type=jnp.float32)
    h1 = h1 + jnp.dot(c, w1c_ref[...], preferred_element_type=jnp.float32)
    h1 = jnp.maximum(h1 + b1_ref[...], 0.0)

    # fused mu/logvar heads: one [H, 2L] matmul, packed [TB, 2L] output
    heads = jnp.dot(h1, wh_ref[...], preferred_element_type=jnp.float32)
    heads = heads + bh_ref[...]
    mu = heads[:, :L]
    logvar = heads[:, L:]

    # reparameterize (training mode): z = eps * exp(0.5*logvar) + mu
    z = eps * jnp.exp(0.5 * logvar) + mu

    # decode: h3 = relu(fc3(cat([z, c], 1))); recon = sigmoid(fc4(h3))
    h3 = jnp.dot(z, w3z_ref[...], preferred_element_type=jnp.float32)
    h3 = h3 + jnp.dot(c, w3c_ref[...], preferred_element_type=jnp.float32)
    h3 = jnp.maximum(h3 + b3_ref[...], 0.0)

    logits = jnp.dot(h3, w4_ref[...], preferred_element_type=jnp.float32) + b4_ref[...]
    recon_ref[...] = jax.nn.sigmoid(logits)
    heads_ref[...] = heads


# ----------------------------------------------------------------------------
# Wrapper
# ----------------------------------------------------------------------------
@functools.partial(jax.jit, static_argnames=("block_b",))
def cvae_forward(x, c, eps, params, *, block_b=None):
    """x: [B, 1, 28, 28] (or [B, 784]), c: [B, C], eps: [B, L]."""
    B = x.shape[0]
    x2d = x.reshape(B, D_IMG).astype(jnp.float32)     # x.view(-1, 28*28)
    c = c.astype(jnp.float32)
    eps = eps.astype(jnp.float32)
    C = c.shape[1]
    L = eps.shape[1]
    H = params["b1"].shape[1]

    # --- wrapper-side weight prep: bf16 weights, fused head weight/bias ------
    wdt = jnp.bfloat16
    w1x = params["w1x"].astype(wdt)                               # [784, H]
    w1c = params["w1c"].astype(wdt)                               # [C, H]
    w_heads = jnp.concatenate([params["w21"], params["w22"]], axis=1).astype(wdt)  # [H, 2L]
    b_heads = jnp.concatenate([params["b21"], params["b22"]], axis=1).astype(jnp.float32)
    w3z = params["w3z"].astype(wdt)                               # [L, H]
    w3c = params["w3c"].astype(wdt)                               # [C, H]
    w4 = params["w4"].astype(wdt)                                 # [H, 784]
    b1 = params["b1"].astype(jnp.float32)
    b3 = params["b3"].astype(jnp.float32)
    b4 = params["b4"].astype(jnp.float32)

    # --- batch tiling: keep tiles well under the 64 MiB VMEM of v7x ----------
    if block_b is None:
        block_b = min(512, _round_up(B, 8))
    TB = block_b
    Bp = _round_up(B, TB)
    if Bp != B:
        pad = Bp - B
        x2d = jnp.pad(x2d, ((0, pad), (0, 0)))
        c_in = jnp.pad(c, ((0, pad), (0, 0)))
        eps_in = jnp.pad(eps, ((0, pad), (0, 0)))
    else:
        c_in, eps_in = c, eps
    num_tiles = Bp // TB

    def batch_spec(feat):
        return pl.BlockSpec((TB, feat), lambda i: (i, 0))

    def resident(arr):
        return pl.BlockSpec(arr.shape, lambda i: (0, 0))

    weights = (w1x, w1c, b1, w_heads, b_heads, w3z, w3c, b3, w4, b4)
    in_specs = ([batch_spec(D_IMG), batch_spec(C), batch_spec(L)]
                + [resident(w) for w in weights])
    out_specs = (batch_spec(D_IMG), batch_spec(2 * L))

    # advisory cost estimate so XLA overlaps this small call with neighbors
    flops = 2 * Bp * (D_IMG * H + C * H + H * (2 * L) + L * H + C * H + H * D_IMG)
    transcendentals = Bp * (L + D_IMG)
    weight_bytes = int(sum(w.size * w.dtype.itemsize for w in weights))
    bytes_accessed = weight_bytes + Bp * 4 * (D_IMG + C + L + D_IMG + 2 * L)
    cost = pl.CostEstimate(flops=int(flops),
                           transcendentals=int(transcendentals),
                           bytes_accessed=int(bytes_accessed))

    recon, heads = pl.pallas_call(
        cvae_kernel,
        grid=(num_tiles,),
        in_specs=in_specs,
        out_specs=out_specs,
        out_shape=(jax.ShapeDtypeStruct((Bp, D_IMG), jnp.float32),
                   jax.ShapeDtypeStruct((Bp, 2 * L), jnp.float32)),
        compiler_params=pltpu.CompilerParams(
            dimension_semantics=("parallel",)),
        cost_estimate=cost,
    )(x2d, c_in, eps_in, *weights)

    recon = recon[:B]
    heads = heads[:B]
    mu = heads[:, :L]
    logvar = heads[:, L:]
    return recon, mu, logvar


def init_params(key, conditional_size, hidden_size, latent_size):
    """Deterministic synthetic parameters; W stored as [in, out]."""
    ks = jax.random.split(key, 14)

    def w(k, fan_in, fan_out):
        return (jax.random.normal(k, (fan_in, fan_out), jnp.float32)
                * (1.0 / jnp.sqrt(fan_in)))

    def b(k, n):
        return jax.random.normal(k, (1, n), jnp.float32) * 0.01

    D, C, H, L = D_IMG, conditional_size, hidden_size, latent_size
    return {
        # fc1: [H, D+C] in torch -> split + transpose
        "w1x": w(ks[0], D, H), "w1c": w(ks[1], C, H), "b1": b(ks[2], H),
        "w21": w(ks[3], H, L), "b21": b(ks[4], L),
        "w22": w(ks[5], H, L), "b22": b(ks[6], L),
        # fc3: [H, L+C] in torch -> split + transpose
        "w3z": w(ks[7], L, H), "w3c": w(ks[8], C, H), "b3": b(ks[9], H),
        "w4":  w(ks[10], H, D), "b4": b(ks[11], D),
    }


def cvae_reference(x, c, eps, p):
    """Plain-JAX reference using the same bf16-quantized weights as the kernel."""
    def q(a):
        return a.astype(jnp.bfloat16).astype(jnp.float32)

    B = x.shape[0]
    x2d = x.reshape(B, D_IMG).astype(jnp.float32)
    h1 = jnp.maximum(x2d @ q(p["w1x"]) + c @ q(p["w1c"]) + p["b1"], 0.0)
    mu = h1 @ q(p["w21"]) + p["b21"]
    logvar = h1 @ q(p["w22"]) + p["b22"]
    z = eps * jnp.exp(0.5 * logvar) + mu
    h3 = jnp.maximum(z @ q(p["w3z"]) + c @ q(p["w3c"]) + p["b3"], 0.0)
    recon = jax.nn.sigmoid(h3 @ q(p["w4"]) + p["b4"])
    return recon, mu, logvar


if __name__ == "__main__":
    B, C, H, L = 8, 10, 32, 16   # batch, conditional_size, hidden_size, latent_size

    key = jax.random.PRNGKey(0)
    k_x, k_c, k_eps, k_p = jax.random.split(key, 4)

    x = jax.random.uniform(k_x, (B, 1, 28, 28), jnp.float32)        # MNIST-like image
    c_idx = jax.random.randint(k_c, (B,), 0, C)
    c = jax.nn.one_hot(c_idx, C, dtype=jnp.float32)                 # conditional one-hot
    eps = jax.random.normal(k_eps, (B, L), jnp.float32)             # reparam noise
    params = init_params(k_p, C, H, L)

    recon, mu, logvar = cvae_forward(x, c, eps, params)
    jax.block_until_ready((recon, mu, logvar))

    # sanity-check against plain-JAX reference (same bf16-quantized weights)
    r_ref, m_ref, lv_ref = cvae_reference(x, c, eps, params)
    assert jnp.allclose(recon, r_ref, atol=1e-4, rtol=1e-4), "recon mismatch"
    assert jnp.allclose(mu, m_ref, atol=1e-4, rtol=1e-4), "mu mismatch"
    assert jnp.allclose(logvar, lv_ref, atol=1e-4, rtol=1e-4), "logvar mismatch"
    assert recon.shape == (B, D_IMG) and mu.shape == (B, L) and logvar.shape == (B, L)

    print("KERNEL_OK")
</pallas_src>

<mosaic_0001>
module attributes {stable_mosaic.version = 11 : i64} {
  func.func @cvae_kernel(%arg0: i32, %arg1: memref<8x784xf32, #tpu.memory_space<vmem>>, %arg2: memref<8x10xf32, #tpu.memory_space<vmem>>, %arg3: memref<8x16xf32, #tpu.memory_space<vmem>>, %arg4: memref<784x32xbf16, #tpu.memory_space<vmem>>, %arg5: memref<10x32xbf16, #tpu.memory_space<vmem>>, %arg6: memref<1x32xf32, #tpu.memory_space<vmem>>, %arg7: memref<32x32xbf16, #tpu.memory_space<vmem>>, %arg8: memref<1x32xf32, #tpu.memory_space<vmem>>, %arg9: memref<16x32xbf16, #tpu.memory_space<vmem>>, %arg10: memref<10x32xbf16, #tpu.memory_space<vmem>>, %arg11: memref<1x32xf32, #tpu.memory_space<vmem>>, %arg12: memref<32x784xbf16, #tpu.memory_space<vmem>>, %arg13: memref<1x784xf32, #tpu.memory_space<vmem>>, %arg14: memref<8x784xf32, #tpu.memory_space<vmem>>, %arg15: memref<8x32xf32, #tpu.memory_space<vmem>>) attributes {dimension_semantics = [#tpu.dimension_semantics<parallel>], iteration_bounds = array<i64: 1>, scalar_prefetch = 0 : i64, scratch_operands = 0 : i64, tpu.core_type = #tpu.core_type<tc>, window_params = [{transform_indices = @transform_0, window_bounds = array<i64: 8, 784>}, {transform_indices = @transform_1, window_bounds = array<i64: 8, 10>}, {transform_indices = @transform_2, window_bounds = array<i64: 8, 16>}, {pipeline_mode = #tpu.pipeline_mode<synchronous>, transform_indices = @transform_3, window_bounds = array<i64: 784, 32>}, {pipeline_mode = #tpu.pipeline_mode<synchronous>, transform_indices = @transform_4, window_bounds = array<i64: 10, 32>}, {pipeline_mode = #tpu.pipeline_mode<synchronous>, transform_indices = @transform_5, window_bounds = array<i64: 1, 32>}, {pipeline_mode = #tpu.pipeline_mode<synchronous>, transform_indices = @transform_6, window_bounds = array<i64: 32, 32>}, {pipeline_mode = #tpu.pipeline_mode<synchronous>, transform_indices = @transform_7, window_bounds = array<i64: 1, 32>}, {pipeline_mode = #tpu.pipeline_mode<synchronous>, transform_indices = @transform_8, window_bounds = array<i64: 16, 32>}, {pipeline_mode = #tpu.pipeline_mode<synchronous>, transform_indices = @transform_9, window_bounds = array<i64: 10, 32>}, {pipeline_mode = #tpu.pipeline_mode<synchronous>, transform_indices = @transform_10, window_bounds = array<i64: 1, 32>}, {pipeline_mode = #tpu.pipeline_mode<synchronous>, transform_indices = @transform_11, window_bounds = array<i64: 32, 784>}, {pipeline_mode = #tpu.pipeline_mode<synchronous>, transform_indices = @transform_12, window_bounds = array<i64: 1, 784>}, {transform_indices = @transform_13, window_bounds = array<i64: 8, 784>}, {transform_indices = @transform_14, window_bounds = array<i64: 8, 32>}]} {
    %c0 = arith.constant 0 : index
    %c0_0 = arith.constant 0 : index
    %0 = vector.load %arg1[%c0, %c0_0] : memref<8x784xf32, #tpu.memory_space<vmem>>, vector<8x784xf32>
    %c0_1 = arith.constant 0 : index
    %c0_2 = arith.constant 0 : index
    %1 = vector.load %arg2[%c0_1, %c0_2] : memref<8x10xf32, #tpu.memory_space<vmem>>, vector<8x10xf32>
    %c0_3 = arith.constant 0 : index
    %c0_4 = arith.constant 0 : index
    %2 = vector.load %arg3[%c0_3, %c0_4] : memref<8x16xf32, #tpu.memory_space<vmem>>, vector<8x16xf32>
    %c0_5 = arith.constant 0 : index
    %c0_6 = arith.constant 0 : index
    %3 = vector.load %arg4[%c0_5, %c0_6] : memref<784x32xbf16, #tpu.memory_space<vmem>>, vector<784x32xbf16>
    %cst = arith.constant dense<0.000000e+00> : vector<8x32xf32>
    %4 = tpu.matmul %0, %3, %cst {dimension_numbers = #tpu.dot_dimension_numbers<[1], [0], [0], [1], [0, 0, 1, 1], [], []>} : vector<8x784xf32>, vector<784x32xbf16>, vector<8x32xf32> -> vector<8x32xf32>
    %c0_7 = arith.constant 0 : index
    %c0_8 = arith.constant 0 : index
    %5 = vector.load %arg5[%c0_7, %c0_8] : memref<10x32xbf16, #tpu.memory_space<vmem>>, vector<10x32xbf16>
    %cst_9 = arith.constant dense<0.000000e+00> : vector<8x32xf32>
    %6 = tpu.matmul %1, %5, %cst_9 {dimension_numbers = #tpu.dot_dimension_numbers<[1], [0], [0], [1], [0, 0, 1, 1], [], []>} : vector<8x10xf32>, vector<10x32xbf16>, vector<8x32xf32> -> vector<8x32xf32>
    %7 = arith.addf %4, %6 : vector<8x32xf32>
    %c0_10 = arith.constant 0 : index
    %c0_11 = arith.constant 0 : index
    %8 = vector.load %arg6[%c0_10, %c0_11] : memref<1x32xf32, #tpu.memory_space<vmem>>, vector<1x32xf32>
    %9 = vector.broadcast %8 : vector<1x32xf32> to vector<8x32xf32>
    %10 = arith.addf %7, %9 : vector<8x32xf32>
    %cst_12 = arith.constant 0.000000e+00 : f32
    %11 = vector.broadcast %cst_12 : f32 to vector<8x32xf32>
    %12 = arith.maximumf %10, %11 : vector<8x32xf32>
    %c0_13 = arith.constant 0 : index
    %c0_14 = arith.constant 0 : index
    %13 = vector.load %arg7[%c0_13, %c0_14] : memref<32x32xbf16, #tpu.memory_space<vmem>>, vector<32x32xbf16>
    %cst_15 = arith.constant dense<0.000000e+00> : vector<8x32xf32>
    %14 = tpu.matmul %12, %13, %cst_15 {dimension_numbers = #tpu.dot_dimension_numbers<[1], [0], [0], [1], [0, 0, 1, 1], [], []>} : vector<8x32xf32>, vector<32x32xbf16>, vector<8x32xf32> -> vector<8x32xf32>
    %c0_16 = arith.constant 0 : index
    %c0_17 = arith.constant 0 : index
    %15 = vector.load %arg8[%c0_16, %c0_17] : memref<1x32xf32, #tpu.memory_space<vmem>>, vector<1x32xf32>
    %16 = vector.broadcast %15 : vector<1x32xf32> to vector<8x32xf32>
    %17 = arith.addf %14, %16 : vector<8x32xf32>
    %18 = vector.extract_strided_slice %17 {offsets = [0, 0], sizes = [8, 16], strides = [1, 1]} : vector<8x32xf32> to vector<8x16xf32>
    %19 = vector.extract_strided_slice %17 {offsets = [0, 16], sizes = [8, 16], strides = [1, 1]} : vector<8x32xf32> to vector<8x16xf32>
    %cst_18 = arith.constant 5.000000e-01 : f32
    %20 = vector.broadcast %cst_18 : f32 to vector<8x16xf32>
    %21 = arith.mulf %20, %19 : vector<8x16xf32>
    %22 = math.exp %21 : vector<8x16xf32>
    %23 = arith.mulf %2, %22 : vector<8x16xf32>
    %24 = arith.addf %23, %18 : vector<8x16xf32>
    %c0_19 = arith.constant 0 : index
    %c0_20 = arith.constant 0 : index
    %25 = vector.load %arg9[%c0_19, %c0_20] : memref<16x32xbf16, #tpu.memory_space<vmem>>, vector<16x32xbf16>
    %cst_21 = arith.constant dense<0.000000e+00> : vector<8x32xf32>
    %26 = tpu.matmul %24, %25, %cst_21 {dimension_numbers = #tpu.dot_dimension_numbers<[1], [0], [0], [1], [0, 0, 1, 1], [], []>} : vector<8x16xf32>, vector<16x32xbf16>, vector<8x32xf32> -> vector<8x32xf32>
    %c0_22 = arith.constant 0 : index
    %c0_23 = arith.constant 0 : index
    %27 = vector.load %arg10[%c0_22, %c0_23] : memref<10x32xbf16, #tpu.memory_space<vmem>>, vector<10x32xbf16>
    %cst_24 = arith.constant dense<0.000000e+00> : vector<8x32xf32>
    %28 = tpu.matmul %1, %27, %cst_24 {dimension_numbers = #tpu.dot_dimension_numbers<[1], [0], [0], [1], [0, 0, 1, 1], [], []>} : vector<8x10xf32>, vector<10x32xbf16>, vector<8x32xf32> -> vector<8x32xf32>
    %29 = arith.addf %26, %28 : vector<8x32xf32>
    %c0_25 = arith.constant 0 : index
    %c0_26 = arith.constant 0 : index
    %30 = vector.load %arg11[%c0_25, %c0_26] : memref<1x32xf32, #tpu.memory_space<vmem>>, vector<1x32xf32>
    %31 = vector.broadcast %30 : vector<1x32xf32> to vector<8x32xf32>
    %32 = arith.addf %29, %31 : vector<8x32xf32>
    %cst_27 = arith.constant 0.000000e+00 : f32
    %33 = vector.broadcast %cst_27 : f32 to vector<8x32xf32>
    %34 = arith.maximumf %32, %33 : vector<8x32xf32>
    %c0_28 = arith.constant 0 : index
    %c0_29 = arith.constant 0 : index
    %35 = vector.load %arg12[%c0_28, %c0_29] : memref<32x784xbf16, #tpu.memory_space<vmem>>, vector<32x784xbf16>
    %cst_30 = arith.constant dense<0.000000e+00> : vector<8x784xf32>
    %36 = tpu.matmul %34, %35, %cst_30 {dimension_numbers = #tpu.dot_dimension_numbers<[1], [0], [0], [1], [0, 0, 1, 1], [], []>} : vector<8x32xf32>, vector<32x784xbf16>, vector<8x784xf32> -> vector<8x784xf32>
    %c0_31 = arith.constant 0 : index
    %c0_32 = arith.constant 0 : index
    %37 = vector.load %arg13[%c0_31, %c0_32] : memref<1x784xf32, #tpu.memory_space<vmem>>, vector<1x784xf32>
    %38 = vector.broadcast %37 : vector<1x784xf32> to vector<8x784xf32>
    %39 = arith.addf %36, %38 : vector<8x784xf32>
    %40 = arith.negf %39 : vector<8x784xf32>
    %41 = math.exp %40 : vector<8x784xf32>
    %cst_33 = arith.constant 1.000000e+00 : f32
    %42 = vector.broadcast %cst_33 : f32 to vector<8x784xf32>
    %43 = arith.addf %42, %41 : vector<8x784xf32>
    %44 = arith.divf %42, %43 : vector<8x784xf32>
    %c0_34 = arith.constant 0 : index
    %c0_35 = arith.constant 0 : index
    %45 = vector.load %arg14[%c0_34, %c0_35] : memref<8x784xf32, #tpu.memory_space<vmem>>, vector<8x784xf32>
    tpu.vector_store %arg14[%c0_34, %c0_35], %44 {strides = array<i32>} : memref<8x784xf32, #tpu.memory_space<vmem>>, vector<8x784xf32>,
    %c0_36 = arith.constant 0 : index
    %c0_37 = arith.constant 0 : index
    %46 = vector.load %arg15[%c0_36, %c0_37] : memref<8x32xf32, #tpu.memory_space<vmem>>, vector<8x32xf32>
    tpu.vector_store %arg15[%c0_36, %c0_37], %17 {strides = array<i32>} : memref<8x32xf32, #tpu.memory_space<vmem>>, vector<8x32xf32>,
    return
  }
  func.func @transform_0(%arg0: i32) -> (i32, i32) {
    %c0_i32 = arith.constant 0 : i32
    %c0_i32_0 = arith.constant 0 : i32
    return %arg0, %c0_i32 : i32, i32
  }
  func.func @transform_1(%arg0: i32) -> (i32, i32) {
    %c0_i32 = arith.constant 0 : i32
    %c0_i32_0 = arith.constant 0 : i32
    return %arg0, %c0_i32 : i32, i32
  }
  func.func @transform_2(%arg0: i32) -> (i32, i32) {
    %c0_i32 = arith.constant 0 : i32
    %c0_i32_0 = arith.constant 0 : i32
    return %arg0, %c0_i32 : i32, i32
  }
  func.func @transform_3(%arg0: i32) -> (i32, i32) {
    %c0_i32 = arith.constant 0 : i32
    %c0_i32_0 = arith.constant 0 : i32
    %c0_i32_1 = arith.constant 0 : i32
    return %c0_i32, %c0_i32_0 : i32, i32
  }
  func.func @transform_4(%arg0: i32) -> (i32, i32) {
    %c0_i32 = arith.constant 0 : i32
    %c0_i32_0 = arith.constant 0 : i32
    %c0_i32_1 = arith.constant 0 : i32
    return %c0_i32, %c0_i32_0 : i32, i32
  }
  func.func @transform_5(%arg0: i32) -> (i32, i32) {
    %c0_i32 = arith.constant 0 : i32
    %c0_i32_0 = arith.constant 0 : i32
    %c0_i32_1 = arith.constant 0 : i32
    return %c0_i32, %c0_i32_0 : i32, i32
  }
  func.func @transform_6(%arg0: i32) -> (i32, i32) {
    %c0_i32 = arith.constant 0 : i32
    %c0_i32_0 = arith.constant 0 : i32
    %c0_i32_1 = arith.constant 0 : i32
    return %c0_i32, %c0_i32_0 : i32, i32
  }
  func.func @transform_7(%arg0: i32) -> (i32, i32) {
    %c0_i32 = arith.constant 0 : i32
    %c0_i32_0 = arith.constant 0 : i32
    %c0_i32_1 = arith.constant 0 : i32
    return %c0_i32, %c0_i32_0 : i32, i32
  }
  func.func @transform_8(%arg0: i32) -> (i32, i32) {
    %c0_i32 = arith.constant 0 : i32
    %c0_i32_0 = arith.constant 0 : i32
    %c0_i32_1 = arith.constant 0 : i32
    return %c0_i32, %c0_i32_0 : i32, i32
  }
  func.func @transform_9(%arg0: i32) -> (i32, i32) {
    %c0_i32 = arith.constant 0 : i32
    %c0_i32_0 = arith.constant 0 : i32
    %c0_i32_1 = arith.constant 0 : i32
    return %c0_i32, %c0_i32_0 : i32, i32
  }
  func.func @transform_10(%arg0: i32) -> (i32, i32) {
    %c0_i32 = arith.constant 0 : i32
    %c0_i32_0 = arith.constant 0 : i32
    %c0_i32_1 = arith.constant 0 : i32
    return %c0_i32, %c0_i32_0 : i32, i32
  }
  func.func @transform_11(%arg0: i32) -> (i32, i32) {
    %c0_i32 = arith.constant 0 : i32
    %c0_i32_0 = arith.constant 0 : i32
    %c0_i32_1 = arith.constant 0 : i32
    return %c0_i32, %c0_i32_0 : i32, i32
  }
  func.func @transform_12(%arg0: i32) -> (i32, i32) {
    %c0_i32 = arith.constant 0 : i32
    %c0_i32_0 = arith.constant 0 : i32
    %c0_i32_1 = arith.constant 0 : i32
    return %c0_i32, %c0_i32_0 : i32, i32
  }
  func.func @transform_13(%arg0: i32) -> (i32, i32) {
    %c0_i32 = arith.constant 0 : i32
    %c0_i32_0 = arith.constant 0 : i32
    return %arg0, %c0_i32 : i32, i32
  }
  func.func @transform_14(%arg0: i32) -> (i32, i32) {
    %c0_i32 = arith.constant 0 : i32
    %c0_i32_0 = arith.constant 0 : i32
    return %arg0, %c0_i32 : i32, i32
  }
}

</mosaic_0001>

<llo_original>
// kernel: cvae_forward.1
$region0: #{cvae_forward.1}
  #allocation0 [shape = 'u32[]', space=smem, size = 0x4, offset = 0x4, fixed_abs, tag = 'smem constant byte address 0x4 - core index']
  #allocation1 [shape = 'u32[144,128]{1,0:T(1,128)}', space=vmem, size = 0x12000, scoped, tag = 'internal scratch']
  %s0 = inlined_call_operand.vmem [shape: f32[8,784], index: 0, kind: input, shape index: {}]
  %s1 = inlined_call_operand.vmem [shape: f32[8,10], index: 1, kind: input, shape index: {}]
  %s2 = inlined_call_operand.vmem [shape: f32[8,16], index: 2, kind: input, shape index: {}]
  %s3 = inlined_call_operand.vmem [shape: bf16[784,32], index: 3, kind: input, shape index: {}]
  %s4 = inlined_call_operand.vmem [shape: bf16[10,32], index: 4, kind: input, shape index: {}]
  %s5 = inlined_call_operand.vmem [shape: f32[1,32], index: 5, kind: input, shape index: {}]
  %s6 = inlined_call_operand.vmem [shape: bf16[32,32], index: 6, kind: input, shape index: {}]
  %s7 = inlined_call_operand.vmem [shape: f32[1,32], index: 7, kind: input, shape index: {}]
  %s8 = inlined_call_operand.vmem [shape: bf16[16,32], index: 8, kind: input, shape index: {}]
  %s9 = inlined_call_operand.vmem [shape: bf16[10,32], index: 9, kind: input, shape index: {}]
  %s10 = inlined_call_operand.vmem [shape: f32[1,32], index: 10, kind: input, shape index: {}]
  %s11 = inlined_call_operand.vmem [shape: bf16[32,784], index: 11, kind: input, shape index: {}]
  %s12 = inlined_call_operand.vmem [shape: f32[1,784], index: 12, kind: input, shape index: {}]
  %s13 = inlined_call_operand.hbm [shape: f32[8,784], index: 13, kind: output, shape index: {0}]
  %s14 = inlined_call_operand.vmem [shape: f32[8,32], index: 14, kind: output, shape index: {1}]
  %15 = xla_tuple %s13, %s14
  %s16 = sld [smem:[#allocation0]]
  $region70: #{cvae_forward.1} parent=0
    _
  %s18 = ssub.s32 1, %s16
  %s19 = scalar_select 0, %s18, %s16
  $region1: #{cvae_forward.1} parent=0
    #allocation2 [shape = 'u8[28672]{0}', space=vmem, size = 0x7000, scoped, tag = 'output window, operand 0, single buffered']
    #allocation3 [shape = 's32[1]{0}', space=sflag, size = 0x4, scoped, tag = 'scoped memory for cvae_forward.1']
    %20 = vsyncpa [#allocation3], 0
    // Predicated region
    $region2: #{cvae_forward.1} parent=1 // pred_check
      _
    $region3: #{cvae_forward.1} parent=1 // pred_check_branch
      %22 = sbr.rel (0) target = $region5
    $region4: #{cvae_forward.1} parent=1 // pred_region
      _
    $region5: #{cvae_forward.1} parent=1 // pred_fallthru
      _
    // Predicated region
    $region6: #{cvae_forward.1} parent=1 // pred_check
      _
    $region7: #{cvae_forward.1} parent=1 // pred_check_branch
      %24 = sbr.rel (0) target = $region9
    $region8: #{cvae_forward.1} parent=1 // pred_region
      _
    $region9: #{cvae_forward.1} parent=1 // pred_fallthru
      _
    // Predicated region
    $region10: #{cvae_forward.1} parent=1 // pred_check
      _
    $region11: #{cvae_forward.1} parent=1 // pred_check_branch
      %26 = sbr.rel (0) target = $region13
    $region12: #{cvae_forward.1} parent=1 // pred_region
      _
    $region13: #{cvae_forward.1} parent=1 // pred_fallthru
      _
    // Predicated region
    $region14: #{cvae_forward.1} parent=1 // pred_check
      _
    $region15: #{cvae_forward.1} parent=1 // pred_check_branch
      %28 = sbr.rel (0) target = $region17
    $region16: #{cvae_forward.1} parent=1 // pred_region
      _
    $region17: #{cvae_forward.1} parent=1 // pred_fallthru
      _
    // Predicated region
    $region18: #{cvae_forward.1} parent=1 // pred_check
      _
    $region19: #{cvae_forward.1} parent=1 // pred_check_branch
      %30 = sbr.rel (0) target = $region21
    $region20: #{cvae_forward.1} parent=1 // pred_region
      _
    $region21: #{cvae_forward.1} parent=1 // pred_fallthru
      _
    // Predicated region
    $region22: #{cvae_forward.1} parent=1 // pred_check
      _
    $region23: #{cvae_forward.1} parent=1 // pred_check_branch
      %32 = sbr.rel (0) target = $region25
    $region24: #{cvae_forward.1} parent=1 // pred_region
      _
    $region25: #{cvae_forward.1} parent=1 // pred_fallthru
      _
    // Predicated region
    $region26: #{cvae_forward.1} parent=1 // pred_check
      _
    $region27: #{cvae_forward.1} parent=1 // pred_check_branch
      %34 = sbr.rel (0) target = $region29
    $region28: #{cvae_forward.1} parent=1 // pred_region
      _
    $region29: #{cvae_forward.1} parent=1 // pred_fallthru
      _
    // Predicated region
    $region30: #{cvae_forward.1} parent=1 // pred_check
      _
    $region31: #{cvae_forward.1} parent=1 // pred_check_branch
      %36 = sbr.rel (0) target = $region33
    $region32: #{cvae_forward.1} parent=1 // pred_region
      _
    $region33: #{cvae_forward.1} parent=1 // pred_fallthru
      _
    // Predicated region
    $region34: #{cvae_forward.1} parent=1 // pred_check
      _
    $region35: #{cvae_forward.1} parent=1 // pred_check_branch
      %38 = sbr.rel (0) target = $region37
    $region36: #{cvae_forward.1} parent=1 // pred_region
      _
    $region37: #{cvae_forward.1} parent=1 // pred_fallthru
      _
    // Predicated region
    $region38: #{cvae_forward.1} parent=1 // pred_check
      _
    $region39: #{cvae_forward.1} parent=1 // pred_check_branch
      %40 = sbr.rel (0) target = $region41
    $region40: #{cvae_forward.1} parent=1 // pred_region
      _
    $region41: #{cvae_forward.1} parent=1 // pred_fallthru
      _
    // Predicated region
    $region42: #{cvae_forward.1} parent=1 // pred_check
      _
    $region43: #{cvae_forward.1} parent=1 // pred_check_branch
      %42 = sbr.rel (0) target = $region45
    $region44: #{cvae_forward.1} parent=1 // pred_region
      _
    $region45: #{cvae_forward.1} parent=1 // pred_fallthru
      _
    // Predicated region
    $region46: #{cvae_forward.1} parent=1 // pred_check
      _
    $region47: #{cvae_forward.1} parent=1 // pred_check_branch
      %44 = sbr.rel (0) target = $region49
    $region48: #{cvae_forward.1} parent=1 // pred_region
      _
    $region49: #{cvae_forward.1} parent=1 // pred_fallthru
      _
    // Predicated region
    $region50: #{cvae_forward.1} parent=1 // pred_check
      _
    $region51: #{cvae_forward.1} parent=1 // pred_check_branch
      %46 = sbr.rel (0) target = $region53
    $region52: #{cvae_forward.1} parent=1 // pred_region
      _
    $region53: #{cvae_forward.1} parent=1 // pred_fallthru
      _
    %v48 = vld [vmem:[%s0] sm:$0xff]
    %v49 = vld [vmem:[%s0 + $0x8] sm:$0xff]
    %v50 = vld [vmem:[%s0 + $0x10] sm:$0xff]
    %v51 = vld [vmem:[%s0 + $0x18] sm:$0xff]
    %v52 = vld [vmem:[%s0 + $0x20] sm:$0xff]
    %v53 = vld [vmem:[%s0 + $0x28] sm:$0xff]
    %v54 = vld [vmem:[%s0 + $0x30] sm:$0xff]
    %v55 = vld [vmem:[%s1] sm:$0xff]
    %v56 = vld [vmem:[%s2] sm:$0xff]
    %v57 = vld [vmem:[%s3] sm:$0xf]
    %v58 = vld [vmem:[%s3 + $0x4] sm:$0xf]
    %v59 = vld [vmem:[%s3 + $0x8] sm:$0xf]
    %v60 = vld [vmem:[%s3 + $0xc] sm:$0xf]
    %v61 = vld [vmem:[%s3 + $0x10] sm:$0xf]
    %v62 = vld [vmem:[%s3 + $0x14] sm:$0xf]
    %v63 = vld [vmem:[%s3 + $0x18] sm:$0xf]
    %v64 = vld [vmem:[%s3 + $0x1c] sm:$0xf]
    %v65 = vld [vmem:[%s3 + $0x20] sm:$0xf]
    %v66 = vld [vmem:[%s3 + $0x24] sm:$0xf]
    %v67 = vld [vmem:[%s3 + $0x28] sm:$0xf]
    %v68 = vld [vmem:[%s3 + $0x2c] sm:$0xf]
    %v69 = vld [vmem:[%s3 + $0x30] sm:$0xf]
    %v70 = vld [vmem:[%s3 + $0x34] sm:$0xf]
    %v71 = vld [vmem:[%s3 + $0x38] sm:$0xf]
    %v72 = vld [vmem:[%s3 + $0x3c] sm:$0xf]
    %v73 = vld [vmem:[%s3 + $0x40] sm:$0xf]
    %v74 = vld [vmem:[%s3 + $0x44] sm:$0xf]
    %v75 = vld [vmem:[%s3 + $0x48] sm:$0xf]
    %v76 = vld [vmem:[%s3 + $0x4c] sm:$0xf]
    %v77 = vld [vmem:[%s3 + $0x50] sm:$0xf]
    %v78 = vld [vmem:[%s3 + $0x54] sm:$0xf]
    %v79 = vld [vmem:[%s3 + $0x58] sm:$0xf]
    %v80 = vld [vmem:[%s3 + $0x5c] sm:$0xf]
    %v81 = vld [vmem:[%s3 + $0x60] sm:$0xf]
    %v82 = vld [vmem:[%s3 + $0x64] sm:$0xf]
    %v83 = vld [vmem:[%s3 + $0x68] sm:$0xf]
    %v84 = vld [vmem:[%s3 + $0x6c] sm:$0xf]
    %v85 = vld [vmem:[%s3 + $0x70] sm:$0xf]
    %v86 = vld [vmem:[%s3 + $0x74] sm:$0xf]
    %v87 = vld [vmem:[%s3 + $0x78] sm:$0xf]
    %v88 = vld [vmem:[%s3 + $0x7c] sm:$0xf]
    %v89 = vld [vmem:[%s3 + $0x80] sm:$0xf]
    %v90 = vld [vmem:[%s3 + $0x84] sm:$0xf]
    %v91 = vld [vmem:[%s3 + $0x88] sm:$0xf]
    %v92 = vld [vmem:[%s3 + $0x8c] sm:$0xf]
    %v93 = vld [vmem:[%s3 + $0x90] sm:$0xf]
    %v94 = vld [vmem:[%s3 + $0x94] sm:$0xf]
    %v95 = vld [vmem:[%s3 + $0x98] sm:$0xf]
    %v96 = vld [vmem:[%s3 + $0x9c] sm:$0xf]
    %v97 = vld [vmem:[%s3 + $0xa0] sm:$0xf]
    %v98 = vld [vmem:[%s3 + $0xa4] sm:$0xf]
    %v99 = vld [vmem:[%s3 + $0xa8] sm:$0xf]
    %v100 = vld [vmem:[%s3 + $0xac] sm:$0xf]
    %v101 = vld [vmem:[%s3 + $0xb0] sm:$0xf]
    %v102 = vld [vmem:[%s3 + $0xb4] sm:$0xf]
    %v103 = vld [vmem:[%s3 + $0xb8] sm:$0xf]
    %v104 = vld [vmem:[%s3 + $0xbc] sm:$0xf]
    %v105 = vld [vmem:[%s3 + $0xc0] sm:$0xf]
    %v106 = vld [vmem:[%s3 + $0xc4] sm:$0xf]
    %v107 = vld [vmem:[%s3 + $0xc8] sm:$0xf]
    %v108 = vld [vmem:[%s3 + $0xcc] sm:$0xf]
    %v109 = vld [vmem:[%s3 + $0xd0] sm:$0xf]
    %v110 = vld [vmem:[%s3 + $0xd4] sm:$0xf]
    %v111 = vld [vmem:[%s3 + $0xd8] sm:$0xf]
    %v112 = vld [vmem:[%s3 + $0xdc] sm:$0xf]
    %v113 = vld [vmem:[%s3 + $0xe0] sm:$0xf]
    %v114 = vld [vmem:[%s3 + $0xe4] sm:$0xf]
    %v115 = vld [vmem:[%s3 + $0xe8] sm:$0xf]
    %v116 = vld [vmem:[%s3 + $0xec] sm:$0xf]
    %v117 = vld [vmem:[%s3 + $0xf0] sm:$0xf]
    %v118 = vld [vmem:[%s3 + $0xf4] sm:$0xf]
    %v119 = vld [vmem:[%s3 + $0xf8] sm:$0xf]
    %v120 = vld [vmem:[%s3 + $0xfc] sm:$0xf]
    %v121 = vld [vmem:[%s3 + $0x100] sm:$0xf]
    %v122 = vld [vmem:[%s3 + $0x104] sm:$0xf]
    %v123 = vld [vmem:[%s3 + $0x108] sm:$0xf]
    %v124 = vld [vmem:[%s3 + $0x10c] sm:$0xf]
    %v125 = vld [vmem:[%s3 + $0x110] sm:$0xf]
    %v126 = vld [vmem:[%s3 + $0x114] sm:$0xf]
    %v127 = vld [vmem:[%s3 + $0x118] sm:$0xf]
    %v128 = vld [vmem:[%s3 + $0x11c] sm:$0xf]
    %v129 = vld [vmem:[%s3 + $0x120] sm:$0xf]
    %v130 = vld [vmem:[%s3 + $0x124] sm:$0xf]
    %v131 = vld [vmem:[%s3 + $0x128] sm:$0xf]
    %v132 = vld [vmem:[%s3 + $0x12c] sm:$0xf]
    %v133 = vld [vmem:[%s3 + $0x130] sm:$0xf]
    %v134 = vld [vmem:[%s3 + $0x134] sm:$0xf]
    %v135 = vld [vmem:[%s3 + $0x138] sm:$0xf]
    %v136 = vld [vmem:[%s3 + $0x13c] sm:$0xf]
    %v137 = vld [vmem:[%s3 + $0x140] sm:$0xf]
    %v138 = vld [vmem:[%s3 + $0x144] sm:$0xf]
    %v139 = vld [vmem:[%s3 + $0x148] sm:$0xf]
    %v140 = vld [vmem:[%s3 + $0x14c] sm:$0xf]
    %v141 = vld [vmem:[%s3 + $0x150] sm:$0xf]
    %v142 = vld [vmem:[%s3 + $0x154] sm:$0xf]
    %v143 = vld [vmem:[%s3 + $0x158] sm:$0xf]
    %v144 = vld [vmem:[%s3 + $0x15c] sm:$0xf]
    %v145 = vld [vmem:[%s3 + $0x160] sm:$0xf]
    %v146 = vld [vmem:[%s3 + $0x164] sm:$0xf]
    %v147 = vld [vmem:[%s3 + $0x168] sm:$0xf]
    %v148 = vld [vmem:[%s3 + $0x16c] sm:$0xf]
    %v149 = vld [vmem:[%s3 + $0x170] sm:$0xf]
    %v150 = vld [vmem:[%s3 + $0x174] sm:$0xf]
    %v151 = vld [vmem:[%s3 + $0x178] sm:$0xf]
    %v152 = vld [vmem:[%s3 + $0x17c] sm:$0xf]
    %v153 = vld [vmem:[%s3 + $0x180] sm:$0xf]
    %v154 = vld [vmem:[%s3 + $0x184] sm:$0xf]
    %v155 = vld [vmem:[%s4] sm:$0xf]
    %v156 = vld [vmem:[%s4 + $0x4] sm:$0x1]
    %v159 = vunpack.c.l.b16 %v155
    %v160 = vunpack.c.l.b16 %v156
    %v161 = vpack.c.b16 %v160, %v159
    %vm162 = vcmask 80896
    %v164 = vsel %vm162, %v55, 0
    %vm166 = vcmask 1044480
    %v168 = vsel %vm166, %v161, 0
    %170 = vmatprep.subr.bf16.mxu0 0
    %171 = vmatpush1.bf16.msra.mxu0 0
    %172 = vmatprep.subr.bf16.mxu0 0
    %173 = vmatpush1.bf16.msra.mxu0 0
    %174 = vmatprep.subr.bf16.mxu0 0
    %175 = vmatpush1.bf16.msra.mxu0 0
    %176 = vmatprep.subr.bf16.mxu0 0
    %177 = vmatpush1.bf16.msra.mxu0 0
    %178 = vmatprep.subr.bf16.mxu0 0
    %179 = vmatpush1.bf16.msra.mxu0 0
    %180 = vmatprep.subr.bf16.mxu0 0
    %181 = vmatpush1.bf16.msra.mxu0 0
    %182 = vmatprep.subr.bf16.mxu0 0
    %183 = vmatpush1.bf16.msra.mxu0 0
    %184 = vmatprep.subr.bf16.mxu0 0
    %185 = vmatpush1.bf16.msra.mxu0 %v168
    %186 = vmatprep.subr.bf16.mxu0 0
    %187 = vmatpush2.bf16.msra.mxu0 0
    %188 = vmatprep.subr.bf16.mxu0 0
    %189 = vmatpush2.bf16.msra.mxu0 0
    %190 = vmatprep.subr.bf16.mxu0 0
    %191 = vmatpush2.bf16.msra.mxu0 0
    %192 = vmatprep.subr.bf16.mxu0 0
    %193 = vmatpush2.bf16.msra.mxu0 0
    %194 = vmatprep.subr.bf16.mxu0 0
    %195 = vmatpush2.bf16.msra.mxu0 0
    %196 = vmatprep.subr.bf16.mxu0 0
    %197 = vmatpush2.bf16.msra.mxu0 0
    %198 = vmatprep.subr.bf16.mxu0 0
    %199 = vmatpush2.bf16.msra.mxu0 0
    %200 = vmatprep.subr.bf16.mxu0 0
    %201 = vmatpush2.bf16.msra.mxu0 0
    %202 = vmatprep.mubr.f32.mxu0 0.0
    %203 = vmatmul.mubr.f32.gmra.mxu0 %v164
    %v204 = vpop.f32.mrf.mxu0
    %v205 = vadd.f32 0.0, %v204
    %v206 = vpop.f32.mrf.mxu0
    %207 = vdwg.mxu0
    %v306 = vunpack.c.l.b16 %v57
    %v307 = vunpack.c.l.b16 %v58
    %v308 = vunpack.c.l.b16 %v59
    %v309 = vunpack.c.l.b16 %v60
    %v310 = vunpack.c.l.b16 %v61
    %v311 = vunpack.c.l.b16 %v62
    %v312 = vunpack.c.l.b16 %v63
    %v313 = vunpack.c.l.b16 %v64
    %v314 = vunpack.c.l.b16 %v65
    %v315 = vunpack.c.l.b16 %v66
    %v316 = vunpack.c.l.b16 %v67
    %v317 = vunpack.c.l.b16 %v68
    %v318 = vunpack.c.l.b16 %v69
    %v319 = vunpack.c.l.b16 %v70
    %v320 = vunpack.c.l.b16 %v71
    %v321 = vunpack.c.l.b16 %v72
    %v322 = vunpack.c.l.b16 %v73
    %v323 = vunpack.c.l.b16 %v74
    %v324 = vunpack.c.l.b16 %v75
    %v325 = vunpack.c.l.b16 %v76
    %v326 = vunpack.c.l.b16 %v77
    %v327 = vunpack.c.l.b16 %v78
    %v328 = vunpack.c.l.b16 %v79
    %v329 = vunpack.c.l.b16 %v80
    %v330 = vunpack.c.l.b16 %v81
    %v331 = vunpack.c.l.b16 %v82
    %v332 = vunpack.c.l.b16 %v83
    %v333 = vunpack.c.l.b16 %v84
    %v334 = vunpack.c.l.b16 %v85
    %v335 = vunpack.c.l.b16 %v86
    %v336 = vunpack.c.l.b16 %v87
    %v337 = vunpack.c.l.b16 %v88
    %v338 = vunpack.c.l.b16 %v89
    %v339 = vunpack.c.l.b16 %v90
    %v340 = vunpack.c.l.b16 %v91
    %v341 = vunpack.c.l.b16 %v92
    %v342 = vunpack.c.l.b16 %v93
    %v343 = vunpack.c.l.b16 %v94
    %v344 = vunpack.c.l.b16 %v95
    %v345 = vunpack.c.l.b16 %v96
    %v346 = vunpack.c.l.b16 %v97
    %v347 = vunpack.c.l.b16 %v98
    %v348 = vunpack.c.l.b16 %v99
    %v349 = vunpack.c.l.b16 %v100
    %v350 = vunpack.c.l.b16 %v101
    %v351 = vunpack.c.l.b16 %v102
    %v352 = vunpack.c.l.b16 %v103
    %v353 = vunpack.c.l.b16 %v104
    %v354 = vunpack.c.l.b16 %v105
    %v355 = vunpack.c.l.b16 %v106
    %v356 = vunpack.c.l.b16 %v107
    %v357 = vunpack.c.l.b16 %v108
    %v358 = vunpack.c.l.b16 %v109
    %v359 = vunpack.c.l.b16 %v110
    %v360 = vunpack.c.l.b16 %v111
    %v361 = vunpack.c.l.b16 %v112
    %v362 = vunpack.c.l.b16 %v113
    %v363 = vunpack.c.l.b16 %v114
    %v364 = vunpack.c.l.b16 %v115
    %v365 = vunpack.c.l.b16 %v116
    %v366 = vunpack.c.l.b16 %v117
    %v367 = vunpack.c.l.b16 %v118
    %v368 = vunpack.c.l.b16 %v119
    %v369 = vunpack.c.l.b16 %v120
    %v370 = vunpack.c.l.b16 %v121
    %v371 = vunpack.c.l.b16 %v122
    %v372 = vunpack.c.l.b16 %v123
    %v373 = vunpack.c.l.b16 %v124
    %v374 = vunpack.c.l.b16 %v125
    %v375 = vunpack.c.l.b16 %v126
    %v376 = vunpack.c.l.b16 %v127
    %v377 = vunpack.c.l.b16 %v128
    %v378 = vunpack.c.l.b16 %v129
    %v379 = vunpack.c.l.b16 %v130
    %v380 = vunpack.c.l.b16 %v131
    %v381 = vunpack.c.l.b16 %v132
    %v382 = vunpack.c.l.b16 %v133
    %v383 = vunpack.c.l.b16 %v134
    %v384 = vunpack.c.l.b16 %v135
    %v385 = vunpack.c.l.b16 %v136
    %v386 = vunpack.c.l.b16 %v137
    %v387 = vunpack.c.l.b16 %v138
    %v388 = vunpack.c.l.b16 %v139
    %v389 = vunpack.c.l.b16 %v140
    %v390 = vunpack.c.l.b16 %v141
    %v391 = vunpack.c.l.b16 %v142
    %v392 = vunpack.c.l.b16 %v143
    %v393 = vunpack.c.l.b16 %v144
    %v394 = vunpack.c.l.b16 %v145
    %v395 = vunpack.c.l.b16 %v146
    %v396 = vunpack.c.l.b16 %v147
    %v397 = vunpack.c.l.b16 %v148
    %v398 = vunpack.c.l.b16 %v149
    %v399 = vunpack.c.l.b16 %v150
    %v400 = vunpack.c.l.b16 %v151
    %v401 = vunpack.c.l.b16 %v152
    %v402 = vunpack.c.l.b16 %v153
    %v403 = vunpack.c.l.b16 %v154
    %v404 = vpack.c.b16 %v307, %v306
    %v405 = vpack.c.b16 %v309, %v308
    %v406 = vpack.c.b16 %v311, %v310
    %v407 = vpack.c.b16 %v313, %v312
    %v408 = vpack.c.b16 %v315, %v314
    %v409 = vpack.c.b16 %v317, %v316
    %v410 = vpack.c.b16 %v319, %v318
    %v411 = vpack.c.b16 %v321, %v320
    %v412 = vpack.c.b16 %v323, %v322
    %v413 = vpack.c.b16 %v325, %v324
    %v414 = vpack.c.b16 %v327, %v326
    %v415 = vpack.c.b16 %v329, %v328
    %v416 = vpack.c.b16 %v331, %v330
    %v417 = vpack.c.b16 %v333, %v332
    %v418 = vpack.c.b16 %v335, %v334
    %v419 = vpack.c.b16 %v337, %v336
    %v420 = vpack.c.b16 %v339, %v338
    %v421 = vpack.c.b16 %v341, %v340
    %v422 = vpack.c.b16 %v343, %v342
    %v423 = vpack.c.b16 %v345, %v344
    %v424 = vpack.c.b16 %v347, %v346
    %v425 = vpack.c.b16 %v349, %v348
    %v426 = vpack.c.b16 %v351, %v350
    %v427 = vpack.c.b16 %v353, %v352
    %v428 = vpack.c.b16 %v355, %v354
    %v429 = vpack.c.b16 %v357, %v356
    %v430 = vpack.c.b16 %v359, %v358
    %v431 = vpack.c.b16 %v361, %v360
    %v432 = vpack.c.b16 %v363, %v362
    %v433 = vpack.c.b16 %v365, %v364
    %v434 = vpack.c.b16 %v367, %v366
    %v435 = vpack.c.b16 %v369, %v368
    %v436 = vpack.c.b16 %v371, %v370
    %v437 = vpack.c.b16 %v373, %v372
    %v438 = vpack.c.b16 %v375, %v374
    %v439 = vpack.c.b16 %v377, %v376
    %v440 = vpack.c.b16 %v379, %v378
    %v441 = vpack.c.b16 %v381, %v380
    %v442 = vpack.c.b16 %v383, %v382
    %v443 = vpack.c.b16 %v385, %v384
    %v444 = vpack.c.b16 %v387, %v386
    %v445 = vpack.c.b16 %v389, %v388
    %v446 = vpack.c.b16 %v391, %v390
    %v447 = vpack.c.b16 %v393, %v392
    %v448 = vpack.c.b16 %v395, %v394
    %v449 = vpack.c.b16 %v397, %v396
    %v450 = vpack.c.b16 %v399, %v398
    %v451 = vpack.c.b16 %v401, %v400
    %v452 = vpack.c.b16 %v403, %v402
    %vm502 = vcmask 130048
    %v504 = vsel %vm502, %v54, 0
    %506 = vmatprep.subr.bf16.mxu0 0
    %507 = vmatpush1.bf16.msra.mxu0 %v411
    %508 = vmatprep.subr.bf16.mxu0 0
    %509 = vmatpush1.bf16.msra.mxu0 %v410
    %510 = vmatprep.subr.bf16.mxu0 0
    %511 = vmatpush1.bf16.msra.mxu0 %v409
    %512 = vmatprep.subr.bf16.mxu0 0
    %513 = vmatpush1.bf16.msra.mxu0 %v408
    %514 = vmatprep.subr.bf16.mxu0 0
    %515 = vmatpush1.bf16.msra.mxu0 %v407
    %516 = vmatprep.subr.bf16.mxu0 0
    %517 = vmatpush1.bf16.msra.mxu0 %v406
    %518 = vmatprep.subr.bf16.mxu0 0
    %519 = vmatpush1.bf16.msra.mxu0 %v405
    %520 = vmatprep.subr.bf16.mxu0 0
    %521 = vmatpush1.bf16.msra.mxu0 %v404
    %522 = vmatprep.subr.bf16.mxu0 0
    %523 = vmatpush2.bf16.msra.mxu0 %v419
    %524 = vmatprep.subr.bf16.mxu0 0
    %525 = vmatpush2.bf16.msra.mxu0 %v418
    %526 = vmatprep.subr.bf16.mxu0 0
    %527 = vmatpush2.bf16.msra.mxu0 %v417
    %528 = vmatprep.subr.bf16.mxu0 0
    %529 = vmatpush2.bf16.msra.mxu0 %v416
    %530 = vmatprep.subr.bf16.mxu0 0
    %531 = vmatpush2.bf16.msra.mxu0 %v415
    %532 = vmatprep.subr.bf16.mxu0 0
    %533 = vmatpush2.bf16.msra.mxu0 %v414
    %534 = vmatprep.subr.bf16.mxu0 0
    %535 = vmatpush2.bf16.msra.mxu0 %v413
    %536 = vmatprep.subr.bf16.mxu0 0
    %537 = vmatpush2.bf16.msra.mxu0 %v412
    %538 = vmatprep.mubr.f32.mxu0 %v49
    %539 = vmatmul.mubr.f32.gmra.mxu0 %v48
    %v540 = vpop.f32.mrf.mxu0
    %v541 = vadd.f32 %v205, %v540
    %v542 = vpop.f32.mrf.mxu0
    %543 = vdwg.mxu0
    %544 = vmatprep.subr.bf16.mxu0 0
    %545 = vmatpush1.bf16.msra.mxu0 %v427
    %546 = vmatprep.subr.bf16.mxu0 0
    %547 = vmatpush1.bf16.msra.mxu0 %v426
    %548 = vmatprep.subr.bf16.mxu0 0
    %549 = vmatpush1.bf16.msra.mxu0 %v425
    %550 = vmatprep.subr.bf16.mxu0 0
    %551 = vmatpush1.bf16.msra.mxu0 %v424
    %552 = vmatprep.subr.bf16.mxu0 0
    %553 = vmatpush1.bf16.msra.mxu0 %v423
    %554 = vmatprep.subr.bf16.mxu0 0
    %555 = vmatpush1.bf16.msra.mxu0 %v422
    %556 = vmatprep.subr.bf16.mxu0 0
    %557 = vmatpush1.bf16.msra.mxu0 %v421
    %558 = vmatprep.subr.bf16.mxu0 0
    %559 = vmatpush1.bf16.msra.mxu0 %v420
    %560 = vmatprep.subr.bf16.mxu0 0
    %561 = vmatpush2.bf16.msra.mxu0 %v435
    %562 = vmatprep.subr.bf16.mxu0 0
    %563 = vmatpush2.bf16.msra.mxu0 %v434
    %564 = vmatprep.subr.bf16.mxu0 0
    %565 = vmatpush2.bf16.msra.mxu0 %v433
    %566 = vmatprep.subr.bf16.mxu0 0
    %567 = vmatpush2.bf16.msra.mxu0 %v432
    %568 = vmatprep.subr.bf16.mxu0 0
    %569 = vmatpush2.bf16.msra.mxu0 %v431
    %570 = vmatprep.subr.bf16.mxu0 0
    %571 = vmatpush2.bf16.msra.mxu0 %v430
    %572 = vmatprep.subr.bf16.mxu0 0
    %573 = vmatpush2.bf16.msra.mxu0 %v429
    %574 = vmatprep.subr.bf16.mxu0 0
    %575 = vmatpush2.bf16.msra.mxu0 %v428
    %576 = vmatprep.mubr.f32.mxu0 %v51
    %577 = vmatmul.mubr.f32.gmra.mxu0 %v50
    %v578 = vpop.f32.mrf.mxu0
    %v579 = vadd.f32 %v541, %v578
    %v580 = vpop.f32.mrf.mxu0
    %581 = vdwg.mxu0
    %582 = vmatprep.subr.bf16.mxu0 0
    %583 = vmatpush1.bf16.msra.mxu0 %v443
    %584 = vmatprep.subr.bf16.mxu0 0
    %585 = vmatpush1.bf16.msra.mxu0 %v442
    %586 = vmatprep.subr.bf16.mxu0 0
    %587 = vmatpush1.bf16.msra.mxu0 %v441
    %588 = vmatprep.subr.bf16.mxu0 0
    %589 = vmatpush1.bf16.msra.mxu0 %v440
    %590 = vmatprep.subr.bf16.mxu0 0
    %591 = vmatpush1.bf16.msra.mxu0 %v439
    %592 = vmatprep.subr.bf16.mxu0 0
    %593 = vmatpush1.bf16.msra.mxu0 %v438
    %594 = vmatprep.subr.bf16.mxu0 0
    %595 = vmatpush1.bf16.msra.mxu0 %v437
    %596 = vmatprep.subr.bf16.mxu0 0
    %597 = vmatpush1.bf16.msra.mxu0 %v436
    %598 = vmatprep.subr.bf16.mxu0 0
    %599 = vmatpush2.bf16.msra.mxu0 %v451
    %600 = vmatprep.subr.bf16.mxu0 0
    %601 = vmatpush2.bf16.msra.mxu0 %v450
    %602 = vmatprep.subr.bf16.mxu0 0
    %603 = vmatpush2.bf16.msra.mxu0 %v449
    %604 = vmatprep.subr.bf16.mxu0 0
    %605 = vmatpush2.bf16.msra.mxu0 %v448
    %606 = vmatprep.subr.bf16.mxu0 0
    %607 = vmatpush2.bf16.msra.mxu0 %v447
    %608 = vmatprep.subr.bf16.mxu0 0
    %609 = vmatpush2.bf16.msra.mxu0 %v446
    %610 = vmatprep.subr.bf16.mxu0 0
    %611 = vmatpush2.bf16.msra.mxu0 %v445
    %612 = vmatprep.subr.bf16.mxu0 0
    %613 = vmatpush2.bf16.msra.mxu0 %v444
    %614 = vmatprep.mubr.f32.mxu0 %v53
    %615 = vmatmul.mubr.f32.gmra.mxu0 %v52
    %v616 = vpop.f32.mrf.mxu0
    %v617 = vadd.f32 %v579, %v616
    %v618 = vpop.f32.mrf.mxu0
    %619 = vdwg.mxu0
    %620 = vmatprep.subr.bf16.mxu0 0
    %621 = vmatpush1.bf16.msra.mxu0 0
    %622 = vmatprep.subr.bf16.mxu0 0
    %623 = vmatpush1.bf16.msra.mxu0 0
    %624 = vmatprep.subr.bf16.mxu0 0
    %625 = vmatpush1.bf16.msra.mxu0 0
    %626 = vmatprep.subr.bf16.mxu0 0
    %627 = vmatpush1.bf16.msra.mxu0 0
    %628 = vmatprep.subr.bf16.mxu0 0
    %629 = vmatpush1.bf16.msra.mxu0 0
    %630 = vmatprep.subr.bf16.mxu0 0
    %631 = vmatpush1.bf16.msra.mxu0 0
    %632 = vmatprep.subr.bf16.mxu0 0
    %633 = vmatpush1.bf16.msra.mxu0 0
    %634 = vmatprep.subr.bf16.mxu0 0
    %635 = vmatpush1.bf16.msra.mxu0 %v452
    %636 = vmatprep.subr.bf16.mxu0 0
    %637 = vmatpush2.bf16.msra.mxu0 0
    %638 = vmatprep.subr.bf16.mxu0 0
    %639 = vmatpush2.bf16.msra.mxu0 0
    %640 = vmatprep.subr.bf16.mxu0 0
    %641 = vmatpush2.bf16.msra.mxu0 0
    %642 = vmatprep.subr.bf16.mxu0 0
    %643 = vmatpush2.bf16.msra.mxu0 0
    %644 = vmatprep.subr.bf16.mxu0 0
    %645 = vmatpush2.bf16.msra.mxu0 0
    %646 = vmatprep.subr.bf16.mxu0 0
    %647 = vmatpush2.bf16.msra.mxu0 0
    %648 = vmatprep.subr.bf16.mxu0 0
    %649 = vmatpush2.bf16.msra.mxu0 0
    %650 = vmatprep.subr.bf16.mxu0 0
    %651 = vmatpush2.bf16.msra.mxu0 0
    %652 = vmatprep.mubr.f32.mxu0 0.0
    %653 = vmatmul.mubr.f32.gmra.mxu0 %v504
    %v654 = vpop.f32.mrf.mxu0
    %v655 = vadd.f32 %v617, %v654
    %v656 = vpop.f32.mrf.mxu0
    %657 = vdwg.mxu0
    %v658 = vld [vmem:[%s5] sm:$0x1]
    %v660 = vlaneseq
    %v661 = vshrl.u32 %v660, 7
    %v662 = vsub.s32 0, %v661
    %v663 = vrot.slane %v658, %v662
    %v665 = vadd.f32 %v655, %v663
    %v666 = vmax.f32 %v665, 0.0
    %v667 = vld [vmem:[%s6] sm:$0xf]
    %v668 = vld [vmem:[%s6 + $0x4] sm:$0xf]
    %v669 = vld [vmem:[%s6 + $0x8] sm:$0xf]
    %v670 = vld [vmem:[%s6 + $0xc] sm:$0xf]
    %v671 = vld [vmem:[%s7] sm:$0x1]
    %v673 = vlaneseq
    %v674 = vshrl.u32 %v673, 7
    %v675 = vsub.s32 0, %v674
    %v676 = vrot.slane %v671, %v675
    %v682 = vunpack.c.l.b16 %v667
    %v683 = vunpack.c.l.b16 %v668
    %v684 = vunpack.c.l.b16 %v669
    %v685 = vunpack.c.l.b16 %v670
    %v686 = vpack.c.b16 %v683, %v682
    %v687 = vpack.c.b16 %v685, %v684
    %vm690 = vcmask 261120
    %v692 = vsel %vm690, %v666, 0
    %694 = vmatprep.subr.bf16.mxu0 0
    %695 = vmatpush1.bf16.msra.mxu0 0
    %696 = vmatprep.subr.bf16.mxu0 0
    %697 = vmatpush1.bf16.msra.mxu0 0
    %698 = vmatprep.subr.bf16.mxu0 0
    %699 = vmatpush1.bf16.msra.mxu0 0
    %700 = vmatprep.subr.bf16.mxu0 0
    %701 = vmatpush1.bf16.msra.mxu0 0
    %702 = vmatprep.subr.bf16.mxu0 0
    %703 = vmatpush1.bf16.msra.mxu0 0
    %704 = vmatprep.subr.bf16.mxu0 0
    %705 = vmatpush1.bf16.msra.mxu0 0
    %706 = vmatprep.subr.bf16.mxu0 0
    %707 = vmatpush1.bf16.msra.mxu0 %v687
    %708 = vmatprep.subr.bf16.mxu0 0
    %709 = vmatpush1.bf16.msra.mxu0 %v686
    %710 = vmatprep.subr.bf16.mxu0 0
    %711 = vmatpush2.bf16.msra.mxu0 0
    %712 = vmatprep.subr.bf16.mxu0 0
    %713 = vmatpush2.bf16.msra.mxu0 0
    %714 = vmatprep.subr.bf16.mxu0 0
    %715 = vmatpush2.bf16.msra.mxu0 0
    %716 = vmatprep.subr.bf16.mxu0 0
    %717 = vmatpush2.bf16.msra.mxu0 0
    %718 = vmatprep.subr.bf16.mxu0 0
    %719 = vmatpush2.bf16.msra.mxu0 0
    %720 = vmatprep.subr.bf16.mxu0 0
    %721 = vmatpush2.bf16.msra.mxu0 0
    %722 = vmatprep.subr.bf16.mxu0 0
    %723 = vmatpush2.bf16.msra.mxu0 0
    %724 = vmatprep.subr.bf16.mxu0 0
    %725 = vmatpush2.bf16.msra.mxu0 0
    %726 = vmatprep.mubr.f32.mxu0 0.0
    %727 = vmatmul.mubr.f32.gmra.mxu0 %v692
    %v728 = vpop.f32.mrf.mxu0
    %v729 = vadd.f32 %v676, %v728
    %v730 = vpop.f32.mrf.mxu0
    %731 = vdwg.mxu0
    %v732 = vmul.f32 %v729, 0.5
    %v733 = vmul.f32 %v732, 1.442695
    %v734 = vpow.pop %v733
    %736 = vrot.lane.b32.xlu0 %v734, 112
    %v737 = vpop.permute.xlu0 %736
    %v739 = vmul.f32 %v56, %v737
    %v740 = vadd.f32 %v739, %v729
    %v741 = vld [vmem:[%s8] sm:$0xf]
    %v742 = vld [vmem:[%s8 + $0x4] sm:$0xf]
    %v743 = vld [vmem:[%s9] sm:$0xf]
    %v744 = vld [vmem:[%s9 + $0x4] sm:$0x1]
    %v747 = vunpack.c.l.b16 %v743
    %v748 = vunpack.c.l.b16 %v744
    %v749 = vpack.c.b16 %v748, %v747
    %v751 = vsel %vm166, %v749, 0
    %753 = vmatprep.subr.bf16.mxu0 0
    %754 = vmatpush1.bf16.msra.mxu0 0
    %755 = vmatprep.subr.bf16.mxu0 0
    %756 = vmatpush1.bf16.msra.mxu0 0
    %757 = vmatprep.subr.bf16.mxu0 0
    %758 = vmatpush1.bf16.msra.mxu0 0
    %759 = vmatprep.subr.bf16.mxu0 0
    %760 = vmatpush1.bf16.msra.mxu0 0
    %761 = vmatprep.subr.bf16.mxu0 0
    %762 = vmatpush1.bf16.msra.mxu0 0
    %763 = vmatprep.subr.bf16.mxu0 0
    %764 = vmatpush1.bf16.msra.mxu0 0
    %765 = vmatprep.subr.bf16.mxu0 0
    %766 = vmatpush1.bf16.msra.mxu0 0
    %767 = vmatprep.subr.bf16.mxu0 0
    %768 = vmatpush1.bf16.msra.mxu0 %v751
    %769 = vmatprep.subr.bf16.mxu0 0
    %770 = vmatpush2.bf16.msra.mxu0 0
    %771 = vmatprep.subr.bf16.mxu0 0
    %772 = vmatpush2.bf16.msra.mxu0 0
    %773 = vmatprep.subr.bf16.mxu0 0
    %774 = vmatpush2.bf16.msra.mxu0 0
    %775 = vmatprep.subr.bf16.mxu0 0
    %776 = vmatpush2.bf16.msra.mxu0 0
    %777 = vmatprep.subr.bf16.mxu0 0
    %778 = vmatpush2.bf16.msra.mxu0 0
    %779 = vmatprep.subr.bf16.mxu0 0
    %780 = vmatpush2.bf16.msra.mxu0 0
    %781 = vmatprep.subr.bf16.mxu0 0
    %782 = vmatpush2.bf16.msra.mxu0 0
    %783 = vmatprep.subr.bf16.mxu0 0
    %784 = vmatpush2.bf16.msra.mxu0 0
    %785 = vmatprep.mubr.f32.mxu0 0.0
    %786 = vmatmul.mubr.f32.gmra.mxu0 %v164
    %v787 = vpop.f32.mrf.mxu0
    %v788 = vadd.f32 0.0, %v787
    %v789 = vpop.f32.mrf.mxu0
    %790 = vdwg.mxu0
    %v793 = vunpack.c.l.b16 %v741
    %v794 = vunpack.c.l.b16 %v742
    %v795 = vpack.c.b16 %v794, %v793
    %v798 = vsel %vm502, %v740, 0
    %800 = vmatprep.subr.bf16.mxu0 0
    %801 = vmatpush1.bf16.msra.mxu0 0
    %802 = vmatprep.subr.bf16.mxu0 0
    %803 = vmatpush1.bf16.msra.mxu0 0
    %804 = vmatprep.subr.bf16.mxu0 0
    %805 = vmatpush1.bf16.msra.mxu0 0
    %806 = vmatprep.subr.bf16.mxu0 0
    %807 = vmatpush1.bf16.msra.mxu0 0
    %808 = vmatprep.subr.bf16.mxu0 0
    %809 = vmatpush1.bf16.msra.mxu0 0
    %810 = vmatprep.subr.bf16.mxu0 0
    %811 = vmatpush1.bf16.msra.mxu0 0
    %812 = vmatprep.subr.bf16.mxu0 0
    %813 = vmatpush1.bf16.msra.mxu0 0
    %814 = vmatprep.subr.bf16.mxu0 0
    %815 = vmatpush1.bf16.msra.mxu0 %v795
    %816 = vmatprep.subr.bf16.mxu0 0
    %817 = vmatpush2.bf16.msra.mxu0 0
    %818 = vmatprep.subr.bf16.mxu0 0
    %819 = vmatpush2.bf16.msra.mxu0 0
    %820 = vmatprep.subr.bf16.mxu0 0
    %821 = vmatpush2.bf16.msra.mxu0 0
    %822 = vmatprep.subr.bf16.mxu0 0
    %823 = vmatpush2.bf16.msra.mxu0 0
    %824 = vmatprep.subr.bf16.mxu0 0
    %825 = vmatpush2.bf16.msra.mxu0 0
    %826 = vmatprep.subr.bf16.mxu0 0
    %827 = vmatpush2.bf16.msra.mxu0 0
    %828 = vmatprep.subr.bf16.mxu0 0
    %829 = vmatpush2.bf16.msra.mxu0 0
    %830 = vmatprep.subr.bf16.mxu0 0
    %831 = vmatpush2.bf16.msra.mxu0 0
    %832 = vmatprep.mubr.f32.mxu0 0.0
    %833 = vmatmul.mubr.f32.gmra.mxu0 %v798
    %v834 = vpop.f32.mrf.mxu0
    %v835 = vadd.f32 %v788, %v834
    %v836 = vpop.f32.mrf.mxu0
    %837 = vdwg.mxu0
    %v838 = vld [vmem:[%s10] sm:$0x1]
    %v840 = vlaneseq
    %v841 = vshrl.u32 %v840, 7
    %v842 = vsub.s32 0, %v841
    %v843 = vrot.slane %v838, %v842
    %v845 = vadd.f32 %v835, %v843
    %v846 = vmax.f32 %v845, 0.0
    %v847 = vld [vmem:[%s11] sm:$0xff]
    %v848 = vld [vmem:[%s11 + $0x8] sm:$0xff]
    %v849 = vld [vmem:[%s11 + $0x10] sm:$0xff]
    %v850 = vld [vmem:[%s11 + $0x18] sm:$0xf]
    %v851 = vld [vmem:[%s11 + $0x1c] sm:$0xff]
    %v852 = vld [vmem:[%s11 + $0x24] sm:$0xff]
    %v853 = vld [vmem:[%s11 + $0x2c] sm:$0xff]
    %v854 = vld [vmem:[%s11 + $0x34] sm:$0xf]
    %v855 = vld [vmem:[%s11 + $0x38] sm:$0xff]
    %v856 = vld [vmem:[%s11 + $0x40] sm:$0xff]
    %v857 = vld [vmem:[%s11 + $0x48] sm:$0xff]
    %v858 = vld [vmem:[%s11 + $0x50] sm:$0xf]
    %v859 = vld [vmem:[%s11 + $0x54] sm:$0xff]
    %v860 = vld [vmem:[%s11 + $0x5c] sm:$0xff]
    %v861 = vld [vmem:[%s11 + $0x64] sm:$0xff]
    %v862 = vld [vmem:[%s11 + $0x6c] sm:$0xf]
    %v863 = vld [vmem:[%s12] sm:$0x7f]
    %v865 = vlaneseq
    %v866 = vshrl.u32 %v865, 7
    %v867 = vsub.s32 0, %v866
    %v868 = vrot.slane %v863, %v867
    %v869 = vlaneseq
    %v870 = vshrl.u32 %v869, 7
    %v871 = vsub.s32 1, %v870
    %v872 = vrot.slane %v863, %v871
    %v873 = vlaneseq
    %v874 = vshrl.u32 %v873, 7
    %v875 = vsub.s32 2, %v874
    %v876 = vrot.slane %v863, %v875
    %v877 = vlaneseq
    %v878 = vshrl.u32 %v877, 7
    %v879 = vsub.s32 3, %v878
    %v880 = vrot.slane %v863, %v879
    %v881 = vlaneseq
    %v882 = vshrl.u32 %v881, 7
    %v883 = vsub.s32 4, %v882
    %v884 = vrot.slane %v863, %v883
    %v885 = vlaneseq
    %v886 = vshrl.u32 %v885, 7
    %v887 = vsub.s32 5, %v886
    %v888 = vrot.slane %v863, %v887
    %v889 = vlaneseq
    %v890 = vshrl.u32 %v889, 7
    %v891 = vsub.s32 6, %v890
    %v892 = vrot.slane %v863, %v891
    %v916 = vunpack.c.l.b16 %v847
    %v917 = vunpack.c.h.b16 %v847
    %v918 = vunpack.c.l.b16 %v848
    %v919 = vunpack.c.h.b16 %v848
    %v920 = vunpack.c.l.b16 %v849
    %v921 = vunpack.c.h.b16 %v849
    %v922 = vunpack.c.l.b16 %v850
    %v923 = vunpack.c.l.b16 %v851
    %v924 = vunpack.c.h.b16 %v851
    %v925 = vunpack.c.l.b16 %v852
    %v926 = vunpack.c.h.b16 %v852
    %v927 = vunpack.c.l.b16 %v853
    %v928 = vunpack.c.h.b16 %v853
    %v929 = vunpack.c.l.b16 %v854
    %v930 = vunpack.c.l.b16 %v855
    %v931 = vunpack.c.h.b16 %v855
    %v932 = vunpack.c.l.b16 %v856
    %v933 = vunpack.c.h.b16 %v856
    %v934 = vunpack.c.l.b16 %v857
    %v935 = vunpack.c.h.b16 %v857
    %v936 = vunpack.c.l.b16 %v858
    %v937 = vunpack.c.l.b16 %v859
    %v938 = vunpack.c.h.b16 %v859
    %v939 = vunpack.c.l.b16 %v860
    %v940 = vunpack.c.h.b16 %v860
    %v941 = vunpack.c.l.b16 %v861
    %v942 = vunpack.c.h.b16 %v861
    %v943 = vunpack.c.l.b16 %v862
    %v944 = vpack.c.b16 %v923, %v916
    %v945 = vpack.c.b16 %v924, %v917
    %v946 = vpack.c.b16 %v925, %v918
    %v947 = vpack.c.b16 %v926, %v919
    %v948 = vpack.c.b16 %v927, %v920
    %v949 = vpack.c.b16 %v928, %v921
    %v950 = vpack.c.b16 %v929, %v922
    %v951 = vpack.c.b16 %v937, %v930
    %v952 = vpack.c.b16 %v938, %v931
    %v953 = vpack.c.b16 %v939, %v932
    %v954 = vpack.c.b16 %v940, %v933
    %v955 = vpack.c.b16 %v941, %v934
    %v956 = vpack.c.b16 %v942, %v935
    %v957 = vpack.c.b16 %v943, %v936
    %v973 = vsel %vm690, %v846, 0
    %975 = vmatprep.subr.bf16.mxu0 0
    %976 = vmatpush1.bf16.msra.mxu0 0
    %977 = vmatprep.subr.bf16.mxu0 0
    %978 = vmatpush1.bf16.msra.mxu0 0
    %979 = vmatprep.subr.bf16.mxu0 0
    %980 = vmatpush1.bf16.msra.mxu0 0
    %981 = vmatprep.subr.bf16.mxu0 0
    %982 = vmatpush1.bf16.msra.mxu0 0
    %983 = vmatprep.subr.bf16.mxu0 0
    %984 = vmatpush1.bf16.msra.mxu0 0
    %985 = vmatprep.subr.bf16.mxu0 0
    %986 = vmatpush1.bf16.msra.mxu0 0
    %987 = vmatprep.subr.bf16.mxu0 %v952
    %988 = vmatpush1.bf16.msra.mxu0 %v951
    %989 = vmatprep.subr.bf16.mxu0 %v945
    %990 = vmatpush1.bf16.msra.mxu0 %v944
    %991 = vmatprep.subr.bf16.mxu0 0
    %992 = vmatpush2.bf16.msra.mxu0 0
    %993 = vmatprep.subr.bf16.mxu0 0
    %994 = vmatpush2.bf16.msra.mxu0 0
    %995 = vmatprep.subr.bf16.mxu0 0
    %996 = vmatpush2.bf16.msra.mxu0 0
    %997 = vmatprep.subr.bf16.mxu0 0
    %998 = vmatpush2.bf16.msra.mxu0 0
    %999 = vmatprep.subr.bf16.mxu0 0
    %1000 = vmatpush2.bf16.msra.mxu0 0
    %1001 = vmatprep.subr.bf16.mxu0 0
    %1002 = vmatpush2.bf16.msra.mxu0 0
    %1003 = vmatprep.subr.bf16.mxu0 0
    %1004 = vmatpush2.bf16.msra.mxu0 0
    %1005 = vmatprep.subr.bf16.mxu0 0
    %1006 = vmatpush2.bf16.msra.mxu0 0
    %1007 = vmatprep.mubr.f32.mxu0 0.0
    %1008 = vmatmul.mubr.f32.gmra.mxu0 %v973
    %v1009 = vpop.f32.mrf.mxu0
    %v1010 = vadd.f32 %v868, %v1009
    %v1011 = vpop.f32.mrf.mxu0
    %v1012 = vadd.f32 %v872, %v1011
    %1013 = vdwg.mxu0
    %1014 = vmatprep.subr.bf16.mxu0 0
    %1015 = vmatpush1.bf16.msra.mxu0 0
    %1016 = vmatprep.subr.bf16.mxu0 0
    %1017 = vmatpush1.bf16.msra.mxu0 0
    %1018 = vmatprep.subr.bf16.mxu0 0
    %1019 = vmatpush1.bf16.msra.mxu0 0
    %1020 = vmatprep.subr.bf16.mxu0 0
    %1021 = vmatpush1.bf16.msra.mxu0 0
    %1022 = vmatprep.subr.bf16.mxu0 0
    %1023 = vmatpush1.bf16.msra.mxu0 0
    %1024 = vmatprep.subr.bf16.mxu0 0
    %1025 = vmatpush1.bf16.msra.mxu0 0
    %1026 = vmatprep.subr.bf16.mxu0 %v954
    %1027 = vmatpush1.bf16.msra.mxu0 %v953
    %1028 = vmatprep.subr.bf16.mxu0 %v947
    %1029 = vmatpush1.bf16.msra.mxu0 %v946
    %1030 = vmatprep.subr.bf16.mxu0 0
    %1031 = vmatpush2.bf16.msra.mxu0 0
    %1032 = vmatprep.subr.bf16.mxu0 0
    %1033 = vmatpush2.bf16.msra.mxu0 0
    %1034 = vmatprep.subr.bf16.mxu0 0
    %1035 = vmatpush2.bf16.msra.mxu0 0
    %1036 = vmatprep.subr.bf16.mxu0 0
    %1037 = vmatpush2.bf16.msra.mxu0 0
    %1038 = vmatprep.subr.bf16.mxu0 0
    %1039 = vmatpush2.bf16.msra.mxu0 0
    %1040 = vmatprep.subr.bf16.mxu0 0
    %1041 = vmatpush2.bf16.msra.mxu0 0
    %1042 = vmatprep.subr.bf16.mxu0 0
    %1043 = vmatpush2.bf16.msra.mxu0 0
    %1044 = vmatprep.subr.bf16.mxu0 0
    %1045 = vmatpush2.bf16.msra.mxu0 0
    %1046 = vmatprep.mubr.f32.mxu0 0.0
    %1047 = vmatmul.mubr.f32.gmra.mxu0 %v973
    %v1048 = vpop.f32.mrf.mxu0
    %v1049 = vadd.f32 %v876, %v1048
    %v1050 = vpop.f32.mrf.mxu0
    %v1051 = vadd.f32 %v880, %v1050
    %1052 = vdwg.mxu0
    %1053 = vmatprep.subr.bf16.mxu0 0
    %1054 = vmatpush1.bf16.msra.mxu0 0
    %1055 = vmatprep.subr.bf16.mxu0 0
    %1056 = vmatpush1.bf16.msra.mxu0 0
    %1057 = vmatprep.subr.bf16.mxu0 0
    %1058 = vmatpush1.bf16.msra.mxu0 0
    %1059 = vmatprep.subr.bf16.mxu0 0
    %1060 = vmatpush1.bf16.msra.mxu0 0
    %1061 = vmatprep.subr.bf16.mxu0 0
    %1062 = vmatpush1.bf16.msra.mxu0 0
    %1063 = vmatprep.subr.bf16.mxu0 0
    %1064 = vmatpush1.bf16.msra.mxu0 0
    %1065 = vmatprep.subr.bf16.mxu0 %v956
    %1066 = vmatpush1.bf16.msra.mxu0 %v955
    %1067 = vmatprep.subr.bf16.mxu0 %v949
    %1068 = vmatpush1.bf16.msra.mxu0 %v948
    %1069 = vmatprep.subr.bf16.mxu0 0
    %1070 = vmatpush2.bf16.msra.mxu0 0
    %1071 = vmatprep.subr.bf16.mxu0 0
    %1072 = vmatpush2.bf16.msra.mxu0 0
    %1073 = vmatprep.subr.bf16.mxu0 0
    %1074 = vmatpush2.bf16.msra.mxu0 0
    %1075 = vmatprep.subr.bf16.mxu0 0
    %1076 = vmatpush2.bf16.msra.mxu0 0
    %1077 = vmatprep.subr.bf16.mxu0 0
    %1078 = vmatpush2.bf16.msra.mxu0 0
    %1079 = vmatprep.subr.bf16.mxu0 0
    %1080 = vmatpush2.bf16.msra.mxu0 0
    %1081 = vmatprep.subr.bf16.mxu0 0
    %1082 = vmatpush2.bf16.msra.mxu0 0
    %1083 = vmatprep.subr.bf16.mxu0 0
    %1084 = vmatpush2.bf16.msra.mxu0 0
    %1085 = vmatprep.mubr.f32.mxu0 0.0
    %1086 = vmatmul.mubr.f32.gmra.mxu0 %v973
    %v1087 = vpop.f32.mrf.mxu0
    %v1088 = vadd.f32 %v884, %v1087
    %v1089 = vpop.f32.mrf.mxu0
    %v1090 = vadd.f32 %v888, %v1089
    %1091 = vdwg.mxu0
    %1092 = vmatprep.subr.bf16.mxu0 0
    %1093 = vmatpush1.bf16.msra.mxu0 0
    %1094 = vmatprep.subr.bf16.mxu0 0
    %1095 = vmatpush1.bf16.msra.mxu0 0
    %1096 = vmatprep.subr.bf16.mxu0 0
    %1097 = vmatpush1.bf16.msra.mxu0 0
    %1098 = vmatprep.subr.bf16.mxu0 0
    %1099 = vmatpush1.bf16.msra.mxu0 0
    %1100 = vmatprep.subr.bf16.mxu0 0
    %1101 = vmatpush1.bf16.msra.mxu0 0
    %1102 = vmatprep.subr.bf16.mxu0 0
    %1103 = vmatpush1.bf16.msra.mxu0 0
    %1104 = vmatprep.subr.bf16.mxu0 0
    %1105 = vmatpush1.bf16.msra.mxu0 %v957
    %1106 = vmatprep.subr.bf16.mxu0 0
    %1107 = vmatpush1.bf16.msra.mxu0 %v950
    %1108 = vmatprep.subr.bf16.mxu0 0
    %1109 = vmatpush2.bf16.msra.mxu0 0
    %1110 = vmatprep.subr.bf16.mxu0 0
    %1111 = vmatpush2.bf16.msra.mxu0 0
    %1112 = vmatprep.subr.bf16.mxu0 0
    %1113 = vmatpush2.bf16.msra.mxu0 0
    %1114 = vmatprep.subr.bf16.mxu0 0
    %1115 = vmatpush2.bf16.msra.mxu0 0
    %1116 = vmatprep.subr.bf16.mxu0 0
    %1117 = vmatpush2.bf16.msra.mxu0 0
    %1118 = vmatprep.subr.bf16.mxu0 0
    %1119 = vmatpush2.bf16.msra.mxu0 0
    %1120 = vmatprep.subr.bf16.mxu0 0
    %1121 = vmatpush2.bf16.msra.mxu0 0
    %1122 = vmatprep.subr.bf16.mxu0 0
    %1123 = vmatpush2.bf16.msra.mxu0 0
    %1124 = vmatprep.mubr.f32.mxu0 0.0
    %1125 = vmatmul.mubr.f32.gmra.mxu0 %v973
    %v1126 = vpop.f32.mrf.mxu0
    %v1127 = vadd.f32 %v892, %v1126
    %v1128 = vpop.f32.mrf.mxu0
    %1129 = vdwg.mxu0
    %v1130 = vxor.u32 %v1010, 2147483648
    %v1131 = vxor.u32 %v1012, 2147483648
    %v1132 = vxor.u32 %v1049, 2147483648
    %v1133 = vxor.u32 %v1051, 2147483648
    %v1134 = vxor.u32 %v1088, 2147483648
    %v1135 = vxor.u32 %v1090, 2147483648
    %v1136 = vxor.u32 %v1127, 2147483648
    %v1137 = vmul.f32 %v1130, 1.442695
    %v1138 = vpow.pop %v1137
    %v1139 = vmul.f32 %v1131, 1.442695
    %v1140 = vpow.pop %v1139
    %v1141 = vmul.f32 %v1132, 1.442695
    %v1142 = vpow.pop %v1141
    %v1143 = vmul.f32 %v1133, 1.442695
    %v1144 = vpow.pop %v1143
    %v1145 = vmul.f32 %v1134, 1.442695
    %v1146 = vpow.pop %v1145
    %v1147 = vmul.f32 %v1135, 1.442695
    %v1148 = vpow.pop %v1147
    %v1149 = vmul.f32 %v1136, 1.442695
    %v1150 = vpow.pop %v1149
    %v1151 = vadd.f32 %v1138, 1.0
    %v1152 = vadd.f32 %v1140, 1.0
    %v1153 = vadd.f32 %v1142, 1.0
    %v1154 = vadd.f32 %v1144, 1.0
    %v1155 = vadd.f32 %v1146, 1.0
    %v1156 = vadd.f32 %v1148, 1.0
    %v1157 = vadd.f32 %v1150, 1.0
    %v1158 = vrcp.pop %v1151
    %v1159 = vmul.f32 1.0, %v1158
    %v1160 = vrcp.pop %v1152
    %v1161 = vmul.f32 1.0, %v1160
    %v1162 = vrcp.pop %v1153
    %v1163 = vmul.f32 1.0, %v1162
    %v1164 = vrcp.pop %v1154
    %v1165 = vmul.f32 1.0, %v1164
    %v1166 = vrcp.pop %v1155
    %v1167 = vmul.f32 1.0, %v1166
    %v1168 = vrcp.pop %v1156
    %v1169 = vmul.f32 1.0, %v1168
    %v1170 = vrcp.pop %v1157
    %v1171 = vmul.f32 1.0, %v1170
    %1172 = vst [vmem:[#allocation2] sm:$0xff] %v1159
    %1173 = vst [vmem:[#allocation2 + $0x8] sm:$0xff] %v1161
    %1174 = vst [vmem:[#allocation2 + $0x10] sm:$0xff] %v1163
    %1175 = vst [vmem:[#allocation2 + $0x18] sm:$0xff] %v1165
    %1176 = vst [vmem:[#allocation2 + $0x20] sm:$0xff] %v1167
    %1177 = vst [vmem:[#allocation2 + $0x28] sm:$0xff] %v1169
    %1178 = vst.msk [vmem:[#allocation2 + $0x30] sm:$0xff] %vm502, %v1171
    %1179 = vst.msk [vmem:[%s14] sm:$0xff] %vm690, %v729
    // Predicated region
    $region54: #{cvae_forward.1} parent=1 // pred_check
      _
    $region55: #{cvae_forward.1} parent=1 // pred_check_branch
      %1181 = sbr.rel (0) target = $region57
    $region56: #{cvae_forward.1} parent=1 // pred_region
      %s1183 = ssub.s32 896, 896
      %1184 = vsyncadd [#allocation3], %s1183
      %s1186 = sshll.u32 [#allocation2], 4
      %s1187 = int_to_ptr.vmem [resolvable:$true] %s1186
      %1189 = dma.vmem_to_hbm [thread:$0]  %s1187, 896, %s13, [#allocation3]
    $region57: #{cvae_forward.1} parent=1 // pred_fallthru
      _
    // Predicated region
    $region58: #{cvae_forward.1} parent=1 // pred_check
      _
    $region59: #{cvae_forward.1} parent=1 // pred_check_branch
      %1191 = sbr.rel (0) target = $region61
    $region60: #{cvae_forward.1} parent=1 // pred_region
      _
    $region61: #{cvae_forward.1} parent=1 // pred_fallthru
      _
    // Predicated region
    $region62: #{cvae_forward.1} parent=1 // pred_check
      _
    $region63: #{cvae_forward.1} parent=1 // pred_check_branch
      %1193 = sbr.rel (0) target = $region65
    $region64: #{cvae_forward.1} parent=1 // pred_region
      %1194 = dma.done [#allocation3], 896
    $region65: #{cvae_forward.1} parent=1 // pred_fallthru
      _
    // Predicated region
    $region66: #{cvae_forward.1} parent=1 // pred_check
      _
    $region67: #{cvae_forward.1} parent=1 // pred_check_branch
      %1196 = sbr.rel (0) target = $region69
    $region68: #{cvae_forward.1} parent=1 // pred_region
      _
    $region69: #{cvae_forward.1} parent=1 // pred_fallthru
      _
    %1197 = vsyncpa [#allocation3], 1

</llo_original>
